<compile_context>
chip_gen: v7x
topology: tpu7x:2x2x1
jax: 0.10.0
libtpu: 0.0.40
codegen_flags: <defaults>
</compile_context>

<pallas_src>
import numpy as np
import jax
import jax.numpy as jnp
from jax.experimental import pallas as pl
from jax.experimental.pallas import tpu as pltpu

POOL_SIZES = (1, 2, 4)
LANE = 128
SUBLANE = 8


def _round_up(x, m):
    return (x + m - 1) // m * m


def _pad1(v, n):
    return jnp.pad(v.astype(jnp.float32), (0, n - v.shape[0]))


def _pad2(a, rows, cols):
    return jnp.pad(a.astype(jnp.float32),
                   ((0, rows - a.shape[0]), (0, cols - a.shape[1])))


def _pick_tile_m(hwp, batch, cap=2048):
    """Largest multiple of 128 dividing hwp and <= cap.

    hwp is already a multiple of 128, so 128 always works (no TM=HW fallback).
    When batch < 2, cap TM so hwp/TM >= 2 and both v7x TensorCores get work.
    """
    cap = min(cap, hwp)
    if batch < 2:
        cap = min(cap, max(LANE, (hwp // 2) // LANE * LANE))
    best = LANE
    t = LANE
    while t <= cap:
        if hwp % t == 0:
            best = t
        t += LANE
    return best


# ----------------------------- Pallas kernels --------------------------------
def _local_kernel(xim_ref,   # (K9, TM)    bf16  im2col columns (pixels on lanes)
                  cw_ref,    # (Csub, K9)  bf16  conv weight (out-channels on sublanes)
                  ba_ref,    # (Csub, 2)   f32   col0 = conv bias, col1 = PReLU alpha
                  ctx_ref,   # (Csub, 1)   f32   global context for this batch
                  out_ref):  # (Csub, TM)  f32   NCHW output tile (lane-dense stores)
    acc = jnp.dot(cw_ref[...], xim_ref[...], preferred_element_type=jnp.float32)
    acc = acc + ba_ref[:, 0:1]
    local = jnp.where(acc >= 0.0, acc, ba_ref[:, 1:2] * acc)     # PReLU
    out_ref[...] = local + ctx_ref[...]                          # broadcast add


def _global_kernel(pooled_ref,          # (Bp, Kpool_pad) f32
                   w1_ref, ba1_ref,     # (Kpool_pad, C2p), (2, C2p)
                   w2_ref, ba2_ref,     # (C2p, Cpad),      (2, Cpad)
                   gw_ref, bag_ref,     # (Cpad, Cpad),     (2, Cpad)  4 fused 1x1 groups
                   ctx_ref):            # (Bp, Cpad) f32
    def prelu(v, ba):
        return jnp.where(v >= 0.0, v, ba[1:2, :] * v)

    g1 = jnp.dot(pooled_ref[...], w1_ref[...],
                 preferred_element_type=jnp.float32) + ba1_ref[0:1, :]
    g1 = prelu(g1, ba1_ref)
    g2 = jnp.dot(g1, w2_ref[...],
                 preferred_element_type=jnp.float32) + ba2_ref[0:1, :]
    g2 = prelu(g2, ba2_ref)
    ctx = jnp.dot(g2, gw_ref[...],
                  preferred_element_type=jnp.float32) + bag_ref[0:1, :]
    ctx_ref[...] = prelu(ctx, bag_ref)


# ------------------------------ host wrapper ----------------------------------
@jax.jit
def improved_global_feature_block(x_nchw, params):
    B, Cin, H, W = x_nchw.shape
    Cout = params["conv_b"].shape[0]
    q = Cout // 4
    HW = H * W
    K9 = 9 * Cin
    C2 = 2 * Cout
    Csub = _round_up(Cout, SUBLANE)          # channel (sublane) pad for the main kernel
    Cpad = _round_up(Cout, LANE)             # lane pad inside the tiny global kernel
    C2p = _round_up(C2, LANE)
    pool_sum = sum(g * g for g in POOL_SIZES)
    Kp = Cin * pool_sum
    Kpp = _round_up(Kp, LANE)
    Bp = _round_up(max(B, SUBLANE), SUBLANE)
    HWp = _round_up(HW, LANE)

    # ---- local branch: NCHW im2col slab built directly in bf16 (no NHWC transpose) ----
    xb = x_nchw.astype(jnp.bfloat16)
    xp = jnp.pad(xb, ((0, 0), (0, 0), (1, 1), (1, 1)))
    patches = [xp[:, :, dy:dy + H, dx:dx + W] for dy in range(3) for dx in range(3)]
    xim = jnp.concatenate(patches, axis=1).reshape(B, K9, HW)     # row = (dy*3+dx)*Cin + c
    if HWp != HW:
        xim = jnp.pad(xim, ((0, 0), (0, 0), (0, HWp - HW)))

    # conv weight as (Cout, 9*Cin): rows = output channels (sublanes), cols match xim rows
    cwT = jnp.transpose(params["conv_w"], (0, 2, 3, 1)).reshape(Cout, K9)
    cw_pad = _pad2(cwT, Csub, K9).astype(jnp.bfloat16)            # K9 left unpadded
    ba = jnp.stack([
        _pad1(params["conv_b"], Csub),
        _pad1(jnp.full((Cout,), params["alpha_local"], jnp.float32), Csub),
    ], axis=1)                                                    # (Csub, 2)

    # ---- global branch: pooled pyramid (host) -> one tiny batched Pallas GEMM ----
    feats = []
    for g in POOL_SIZES:
        bh, bw = H // g, W // g
        pooled = x_nchw.astype(jnp.float32).reshape(B, Cin, g, bh, g, bw).mean(axis=(3, 5))
        feats.append(pooled.reshape(B, Cin * g * g))              # torch flatten(1) order
    pooled_flat = jnp.concatenate(feats, axis=1)                  # (B, Kp)
    pooled_pad = jnp.pad(pooled_flat, ((0, Bp - B), (0, Kpp - Kp)))

    w1_pad = _pad2(params["fc1_w"].T, Kpp, C2p)
    ba1 = jnp.stack([
        _pad1(params["fc1_b"], C2p),
        _pad1(jnp.full((C2,), params["alpha_fc1"], jnp.float32), C2p),
    ])
    w2_pad = _pad2(params["fc2_w"].T, C2p, Cpad)
    ba2 = jnp.stack([
        _pad1(params["fc2_b"], Cpad),
        _pad1(jnp.full((Cout,), params["alpha_fc2"], jnp.float32), Cpad),
    ])
    gmat = jnp.concatenate([params["group_w"][k][:, :, 0, 0].T for k in range(4)], axis=1)
    gw_pad = _pad2(gmat, Cpad, Cpad)
    gb = jnp.concatenate([params["group_b"][k] for k in range(4)])
    ag = jnp.concatenate([jnp.full((q,), params["alpha_groups"][k], jnp.float32)
                          for k in range(4)])
    bag = jnp.stack([_pad1(gb, Cpad), _pad1(ag, Cpad)])

    ctx_pad = pl.pallas_call(
        _global_kernel,
        out_shape=jax.ShapeDtypeStruct((Bp, Cpad), jnp.float32),
    )(pooled_pad, w1_pad, ba1, w2_pad, ba2, gw_pad, bag)

    # tiny relayout (B*Cout floats): channels move from lanes to sublanes for the main kernel
    ctx3 = jnp.pad(ctx_pad[:B, :Cout], ((0, 0), (0, Csub - Cout))).reshape(B, Csub, 1)

    # ---- main kernel: transposed im2col GEMM + PReLU + broadcast add, NCHW output ----
    TM = _pick_tile_m(HWp, B)
    grid = (B, HWp // TM)

    out = pl.pallas_call(
        _local_kernel,
        out_shape=jax.ShapeDtypeStruct((B, Csub, HWp), jnp.float32),
        grid_spec=pltpu.PrefetchScalarGridSpec(
            num_scalar_prefetch=0,
            grid=grid,
            in_specs=[
                pl.BlockSpec((None, K9, TM), lambda b, m: (b, 0, m)),   # im2col tile (K9, TM)
                pl.BlockSpec((Csub, K9), lambda b, m: (0, 0)),          # conv weight (resident)
                pl.BlockSpec((Csub, 2), lambda b, m: (0, 0)),           # packed bias + alpha
                pl.BlockSpec((None, Csub, 1), lambda b, m: (b, 0, 0)),  # ctx column for batch b
            ],
            out_specs=pl.BlockSpec((None, Csub, TM), lambda b, m: (b, 0, m)),
        ),
        compiler_params=pltpu.CompilerParams(
            dimension_semantics=("parallel", "parallel"),
            vmem_limit_bytes=32 * 1024 * 1024,
        ),
    )(xim, cw_pad, ba, ctx3)

    # slices/reshape are no-ops when Cout % 8 == 0 and HW % 128 == 0
    return out[:, :Cout, :HW].reshape(B, Cout, H, W)


# ------------------- deterministic parameter construction ---------------------
def init_params(Cin, Cout, seed=42):
    pool_sum = sum(g * g for g in POOL_SIZES)
    q = Cout // 4
    rng = np.random.RandomState(seed)

    def rnd(shape, fan_in):
        s = 1.0 / np.sqrt(fan_in)
        return rng.uniform(-s, s, size=shape).astype(np.float32)

    params = dict(
        conv_w=rnd((Cout, Cin, 3, 3), Cin * 9),
        conv_b=rnd((Cout,), Cin * 9),
        fc1_w=rnd((2 * Cout, Cin * pool_sum), Cin * pool_sum),
        fc1_b=rnd((2 * Cout,), Cin * pool_sum),
        fc2_w=rnd((Cout, 2 * Cout), 2 * Cout),
        fc2_b=rnd((Cout,), 2 * Cout),
        group_w=[rnd((q, Cout, 1, 1), Cout) for _ in range(4)],
        group_b=[rnd((q,), Cout) for _ in range(4)],
        # nn.PReLU() default: one shared parameter per module, init 0.25
        alpha_local=np.float32(0.25),
        alpha_fc1=np.float32(0.25),
        alpha_fc2=np.float32(0.25),
        alpha_groups=[np.float32(0.25) for _ in range(4)],
    )
    return jax.tree_util.tree_map(jnp.asarray, params)


# ------------------------ pure-JAX reference (checks) -------------------------
def _reference(x_nchw, p):
    B, Cin, H, W = x_nchw.shape
    Cout = p["conv_b"].shape[0]
    prelu = lambda v, a: jnp.where(v >= 0, v, a * v)
    lf = jax.lax.conv_general_dilated(
        x_nchw.astype(jnp.float32), p["conv_w"], (1, 1), ((1, 1), (1, 1)),
        dimension_numbers=("NCHW", "OIHW", "NCHW"))
    lf = prelu(lf + p["conv_b"].reshape(1, Cout, 1, 1), p["alpha_local"])
    feats = []
    for g in POOL_SIZES:
        bh, bw = H // g, W // g
        pooled = x_nchw.astype(jnp.float32).reshape(B, Cin, g, bh, g, bw).mean(axis=(3, 5))
        feats.append(pooled.reshape(B, Cin * g * g))
    f = jnp.concatenate(feats, axis=1)
    g1 = prelu(f @ p["fc1_w"].T + p["fc1_b"], p["alpha_fc1"])
    g2 = prelu(g1 @ p["fc2_w"].T + p["fc2_b"], p["alpha_fc2"])
    groups = [prelu(g2 @ p["group_w"][k][:, :, 0, 0].T + p["group_b"][k], p["alpha_groups"][k])
              for k in range(4)]
    ctx = jnp.concatenate(groups, axis=1)[:, :, None, None]
    return lf + ctx


# ----------------------------------- main --------------------------------------
if __name__ == "__main__":
    B, Cin, Cout, H, W = 2, 4, 8, 16, 16
    x = jax.random.normal(jax.random.PRNGKey(0), (B, Cin, H, W), dtype=jnp.float32)
    params = init_params(Cin, Cout)

    y = improved_global_feature_block(x, params)
    y = jax.block_until_ready(y)
    assert y.shape == (B, Cout, H, W)

    y_ref = jax.block_until_ready(_reference(x, params))
    # bf16-quantized im2col/conv-weight (f32 accumulation) -> loosened tolerance.
    np.testing.assert_allclose(np.asarray(y), np.asarray(y_ref), rtol=2e-2, atol=2e-2)

    print("KERNEL_OK")
</pallas_src>

<mosaic_0001>
module attributes {stable_mosaic.version = 11 : i64} {
  func.func @_global_kernel(%arg0: memref<8x128xf32, #tpu.memory_space<vmem>>, %arg1: memref<128x128xf32, #tpu.memory_space<vmem>>, %arg2: memref<2x128xf32, #tpu.memory_space<vmem>>, %arg3: memref<128x128xf32, #tpu.memory_space<vmem>>, %arg4: memref<2x128xf32, #tpu.memory_space<vmem>>, %arg5: memref<128x128xf32, #tpu.memory_space<vmem>>, %arg6: memref<2x128xf32, #tpu.memory_space<vmem>>, %arg7: memref<8x128xf32, #tpu.memory_space<vmem>>) attributes {dimension_semantics = [], scalar_prefetch = 0 : i64, scratch_operands = 0 : i64, tpu.core_type = #tpu.core_type<tc>} {
    %c0 = arith.constant 0 : index
    %c0_0 = arith.constant 0 : index
    %0 = vector.load %arg0[%c0, %c0_0] : memref<8x128xf32, #tpu.memory_space<vmem>>, vector<8x128xf32>
    %c0_1 = arith.constant 0 : index
    %c0_2 = arith.constant 0 : index
    %1 = vector.load %arg1[%c0_1, %c0_2] : memref<128x128xf32, #tpu.memory_space<vmem>>, vector<128x128xf32>
    %cst = arith.constant dense<0.000000e+00> : vector<8x128xf32>
    %2 = tpu.matmul %0, %1, %cst {dimension_numbers = #tpu.dot_dimension_numbers<[1], [0], [0], [1], [0, 0, 1, 1], [], []>} : vector<8x128xf32>, vector<128x128xf32>, vector<8x128xf32> -> vector<8x128xf32>
    %c0_3 = arith.constant 0 : index
    %c0_4 = arith.constant 0 : index
    %3 = vector.load %arg2[%c0_3, %c0_4] : memref<2x128xf32, #tpu.memory_space<vmem>>, vector<1x128xf32>
    %4 = vector.broadcast %3 : vector<1x128xf32> to vector<8x128xf32>
    %5 = arith.addf %2, %4 : vector<8x128xf32>
    %cst_5 = arith.constant 0.000000e+00 : f32
    %6 = vector.broadcast %cst_5 : f32 to vector<8x128xf32>
    %7 = arith.cmpf oge, %5, %6 : vector<8x128xf32>
    %c1 = arith.constant 1 : index
    %c0_6 = arith.constant 0 : index
    %8 = vector.load %arg2[%c1, %c0_6] : memref<2x128xf32, #tpu.memory_space<vmem>>, vector<1x128xf32>
    %9 = vector.broadcast %8 : vector<1x128xf32> to vector<8x128xf32>
    %10 = arith.mulf %9, %5 : vector<8x128xf32>
    %11 = arith.select %7, %5, %10 : vector<8x128xi1>, vector<8x128xf32>
    %c0_7 = arith.constant 0 : index
    %c0_8 = arith.constant 0 : index
    %12 = vector.load %arg3[%c0_7, %c0_8] : memref<128x128xf32, #tpu.memory_space<vmem>>, vector<128x128xf32>
    %cst_9 = arith.constant dense<0.000000e+00> : vector<8x128xf32>
    %13 = tpu.matmul %11, %12, %cst_9 {dimension_numbers = #tpu.dot_dimension_numbers<[1], [0], [0], [1], [0, 0, 1, 1], [], []>} : vector<8x128xf32>, vector<128x128xf32>, vector<8x128xf32> -> vector<8x128xf32>
    %c0_10 = arith.constant 0 : index
    %c0_11 = arith.constant 0 : index
    %14 = vector.load %arg4[%c0_10, %c0_11] : memref<2x128xf32, #tpu.memory_space<vmem>>, vector<1x128xf32>
    %15 = vector.broadcast %14 : vector<1x128xf32> to vector<8x128xf32>
    %16 = arith.addf %13, %15 : vector<8x128xf32>
    %cst_12 = arith.constant 0.000000e+00 : f32
    %17 = vector.broadcast %cst_12 : f32 to vector<8x128xf32>
    %18 = arith.cmpf oge, %16, %17 : vector<8x128xf32>
    %c1_13 = arith.constant 1 : index
    %c0_14 = arith.constant 0 : index
    %19 = vector.load %arg4[%c1_13, %c0_14] : memref<2x128xf32, #tpu.memory_space<vmem>>, vector<1x128xf32>
    %20 = vector.broadcast %19 : vector<1x128xf32> to vector<8x128xf32>
    %21 = arith.mulf %20, %16 : vector<8x128xf32>
    %22 = arith.select %18, %16, %21 : vector<8x128xi1>, vector<8x128xf32>
    %c0_15 = arith.constant 0 : index
    %c0_16 = arith.constant 0 : index
    %23 = vector.load %arg5[%c0_15, %c0_16] : memref<128x128xf32, #tpu.memory_space<vmem>>, vector<128x128xf32>
    %cst_17 = arith.constant dense<0.000000e+00> : vector<8x128xf32>
    %24 = tpu.matmul %22, %23, %cst_17 {dimension_numbers = #tpu.dot_dimension_numbers<[1], [0], [0], [1], [0, 0, 1, 1], [], []>} : vector<8x128xf32>, vector<128x128xf32>, vector<8x128xf32> -> vector<8x128xf32>
    %c0_18 = arith.constant 0 : index
    %c0_19 = arith.constant 0 : index
    %25 = vector.load %arg6[%c0_18, %c0_19] : memref<2x128xf32, #tpu.memory_space<vmem>>, vector<1x128xf32>
    %26 = vector.broadcast %25 : vector<1x128xf32> to vector<8x128xf32>
    %27 = arith.addf %24, %26 : vector<8x128xf32>
    %cst_20 = arith.constant 0.000000e+00 : f32
    %28 = vector.broadcast %cst_20 : f32 to vector<8x128xf32>
    %29 = arith.cmpf oge, %27, %28 : vector<8x128xf32>
    %c1_21 = arith.constant 1 : index
    %c0_22 = arith.constant 0 : index
    %30 = vector.load %arg6[%c1_21, %c0_22] : memref<2x128xf32, #tpu.memory_space<vmem>>, vector<1x128xf32>
    %31 = vector.broadcast %30 : vector<1x128xf32> to vector<8x128xf32>
    %32 = arith.mulf %31, %27 : vector<8x128xf32>
    %33 = arith.select %29, %27, %32 : vector<8x128xi1>, vector<8x128xf32>
    %c0_23 = arith.constant 0 : index
    %c0_24 = arith.constant 0 : index
    %34 = vector.load %arg7[%c0_23, %c0_24] : memref<8x128xf32, #tpu.memory_space<vmem>>, vector<8x128xf32>
    tpu.vector_store %arg7[%c0_23, %c0_24], %33 {strides = array<i32>} : memref<8x128xf32, #tpu.memory_space<vmem>>, vector<8x128xf32>,
    return
  }
}

module attributes {stable_mosaic.version = 11 : i64} {
  func.func @_local_kernel(%arg0: i32, %arg1: i32, %arg2: memref<1x36x256xbf16, #tpu.memory_space<vmem>>, %arg3: memref<8x36xbf16, #tpu.memory_space<vmem>>, %arg4: memref<8x2xf32, #tpu.memory_space<vmem>>, %arg5: memref<1x8x1xf32, #tpu.memory_space<vmem>>, %arg6: memref<1x8x256xf32, #tpu.memory_space<vmem>>) attributes {dimension_semantics = [#tpu.dimension_semantics<parallel>, #tpu.dimension_semantics<parallel>], iteration_bounds = array<i64: 2, 1>, scalar_prefetch = 0 : i64, scratch_operands = 0 : i64, tpu.core_type = #tpu.core_type<tc>, window_params = [{transform_indices = @transform_0, window_bounds = array<i64: 1, 36, 256>}, {pipeline_mode = #tpu.pipeline_mode<synchronous>, transform_indices = @transform_1, window_bounds = array<i64: 8, 36>}, {pipeline_mode = #tpu.pipeline_mode<synchronous>, transform_indices = @transform_2, window_bounds = array<i64: 8, 2>}, {transform_indices = @transform_3, window_bounds = array<i64: 1, 8, 1>}, {transform_indices = @transform_4, window_bounds = array<i64: 1, 8, 256>}]} {
    %c0 = arith.constant 0 : index
    %c0_0 = arith.constant 0 : index
    %0 = vector.load %arg3[%c0, %c0_0] : memref<8x36xbf16, #tpu.memory_space<vmem>>, vector<8x36xbf16>
    %c0_1 = arith.constant 0 : index
    %c0_2 = arith.constant 0 : index
    %c0_3 = arith.constant 0 : index
    %1 = vector.load %arg2[%c0_1, %c0_2, %c0_3] : memref<1x36x256xbf16, #tpu.memory_space<vmem>>, vector<1x36x256xbf16>
    %2 = vector.shape_cast %1 : vector<1x36x256xbf16> to vector<36x256xbf16>
    %cst = arith.constant dense<0.000000e+00> : vector<8x256xf32>
    %3 = tpu.matmul %0, %2, %cst {dimension_numbers = #tpu.dot_dimension_numbers<[1], [0], [0], [1], [0, 0, 1, 1], [], []>} : vector<8x36xbf16>, vector<36x256xbf16>, vector<8x256xf32> -> vector<8x256xf32>
    %c0_4 = arith.constant 0 : index
    %c0_5 = arith.constant 0 : index
    %4 = vector.load %arg4[%c0_4, %c0_5] : memref<8x2xf32, #tpu.memory_space<vmem>>, vector<8x1xf32>
    %5 = vector.broadcast %4 : vector<8x1xf32> to vector<8x256xf32>
    %6 = arith.addf %3, %5 : vector<8x256xf32>
    %cst_6 = arith.constant 0.000000e+00 : f32
    %7 = vector.broadcast %cst_6 : f32 to vector<8x256xf32>
    %8 = arith.cmpf oge, %6, %7 : vector<8x256xf32>
    %c0_7 = arith.constant 0 : index
    %c1 = arith.constant 1 : index
    %9 = vector.load %arg4[%c0_7, %c1] : memref<8x2xf32, #tpu.memory_space<vmem>>, vector<8x1xf32>
    %10 = vector.broadcast %9 : vector<8x1xf32> to vector<8x256xf32>
    %11 = arith.mulf %10, %6 : vector<8x256xf32>
    %12 = arith.select %8, %6, %11 : vector<8x256xi1>, vector<8x256xf32>
    %c0_8 = arith.constant 0 : index
    %c0_9 = arith.constant 0 : index
    %c0_10 = arith.constant 0 : index
    %13 = vector.load %arg5[%c0_8, %c0_9, %c0_10] : memref<1x8x1xf32, #tpu.memory_space<vmem>>, vector<1x8x1xf32>
    %14 = vector.shape_cast %13 : vector<1x8x1xf32> to vector<8x1xf32>
    %15 = vector.broadcast %14 : vector<8x1xf32> to vector<8x256xf32>
    %16 = arith.addf %12, %15 : vector<8x256xf32>
    %c0_11 = arith.constant 0 : index
    %c0_12 = arith.constant 0 : index
    %c0_13 = arith.constant 0 : index
    %17 = vector.load %arg6[%c0_11, %c0_12, %c0_13] : memref<1x8x256xf32, #tpu.memory_space<vmem>>, vector<1x8x256xf32>
    %18 = vector.shape_cast %17 : vector<1x8x256xf32> to vector<8x256xf32>
    %19 = vector.shape_cast %16 : vector<8x256xf32> to vector<1x8x256xf32>
    tpu.vector_store %arg6[%c0_11, %c0_12, %c0_13], %19 {strides = array<i32>} : memref<1x8x256xf32, #tpu.memory_space<vmem>>, vector<1x8x256xf32>,
    return
  }
  func.func @transform_0(%arg0: i32, %arg1: i32) -> (i32, i32, i32) {
    %c0_i32 = arith.constant 0 : i32
    %c0_i32_0 = arith.constant 0 : i32
    return %arg0, %c0_i32, %arg1 : i32, i32, i32
  }
  func.func @transform_1(%arg0: i32, %arg1: i32) -> (i32, i32) {
    %c0_i32 = arith.constant 0 : i32
    %c0_i32_0 = arith.constant 0 : i32
    %c0_i32_1 = arith.constant 0 : i32
    return %c0_i32, %c0_i32_0 : i32, i32
  }
  func.func @transform_2(%arg0: i32, %arg1: i32) -> (i32, i32) {
    %c0_i32 = arith.constant 0 : i32
    %c0_i32_0 = arith.constant 0 : i32
    %c0_i32_1 = arith.constant 0 : i32
    return %c0_i32, %c0_i32_0 : i32, i32
  }
  func.func @transform_3(%arg0: i32, %arg1: i32) -> (i32, i32, i32) {
    %c0_i32 = arith.constant 0 : i32
    %c0_i32_0 = arith.constant 0 : i32
    %c0_i32_1 = arith.constant 0 : i32
    return %arg0, %c0_i32, %c0_i32_0 : i32, i32, i32
  }
  func.func @transform_4(%arg0: i32, %arg1: i32) -> (i32, i32, i32) {
    %c0_i32 = arith.constant 0 : i32
    %c0_i32_0 = arith.constant 0 : i32
    return %arg0, %c0_i32, %arg1 : i32, i32, i32
  }
}

</mosaic_0001>

<llo_original>
// kernel: improved_global_feature_block.3
$region0: #{improved_global_feature_block.3}
  #allocation0 [shape = 'u32[]', space=smem, size = 0x4, offset = 0x4, fixed_abs, tag = 'smem constant byte address 0x4 - core index']
  #allocation1 [shape = 'u32[144,128]{1,0:T(1,128)}', space=vmem, size = 0x12000, scoped, tag = 'internal scratch']
  %s0 = inlined_call_operand.vmem [shape: bf16[2,36,256], index: 0, kind: input, shape index: {}]
  %s1 = inlined_call_operand.vmem [shape: bf16[8,36], index: 1, kind: input, shape index: {}]
  %s2 = inlined_call_operand.vmem [shape: f32[8,2], index: 2, kind: input, shape index: {}]
  %s3 = inlined_call_operand.vmem [shape: f32[2,8,1], index: 3, kind: input, shape index: {}]
  %s4 = inlined_call_operand.vmem [shape: f32[2,8,256], index: 4, kind: output, shape index: {}]
  %s5 = sld [smem:[#allocation0]]
  $region49: #{improved_global_feature_block.3} parent=0
    _
  %s7 = ssub.s32 1, %s5
  %s8 = scalar_select 0, %s7, %s5
  loop: start=0, step=1, limit=4
  $region2: #{improved_global_feature_block.3} parent=0 // loop_pre_header
    _
  $region3: #{improved_global_feature_block.3} parent=0 // loop_header
    %s10 = sphi 0, %s14
    %p11 = scmp.ge.s32.totalorder %s10, 4
    %s17 = sphi 0, %s29
    %s18 = sphi 0, %s25
    %s19 = sphi 0, %s17
    %s20 = sphi 0, %s18
    %s21 = sphi 0, %s19
    %s22 = sphi 0, %s20
    %s34 = sphi 0, %s36
    %s37 = sphi 0, %s34
    %s38 = sphi 0, %s37
    %s54 = sphi 0, %s38
    %s58 = sphi 0, %s58
    %s60 = sphi 0, %s58
    %s61 = sphi 0, %s60
    %s75 = sphi 0, %s61
    %s79 = sphi 0, %s79
    %s81 = sphi 0, %s79
    %s82 = sphi 0, %s81
    %s96 = sphi 0, %s82
    %s102 = sphi 0, %s104
    %s105 = sphi 0, %s102
    %s106 = sphi 0, %s105
    %s122 = sphi 0, %s106
    %s130 = sphi 0, %s132
    %s133 = sphi 0, %s130
    %s134 = sphi 0, %s133
    %s150 = sphi 0, %s134
  $region4: #{improved_global_feature_block.3} parent=0 // loop_header_branch
    %13 = sbr.rel (%p11) target = $region8
  $region5: #{improved_global_feature_block.3} parent=0 // loop_body
    %s15 = ssub.s32 %s10, 1
    %s16 = ssub.s32 %s10, 2
    %s23 = sadd.s32 1, %s18
    %p24 = scmp.ge.s32.totalorder %s23, 1
    %s25 = scalar_select %p24, 0, %s23
    %s26 = sadd.s32 1, %s17
    %s27 = scalar_select %p24, %s26, %s17
    %p28 = scmp.ge.s32.totalorder %s27, 2
    %s29 = scalar_select %p28, 0, %s27
    %s30 = ssub.s32 %s17, %s29
    %s31 = ssub.s32 %s18, %s25
    %s32 = sor.u32 %s30, %s31
    %p33 = scmp.eq.s32.totalorder %s32, 0
    %s35 = sadd.s32 %s34, 1
    %s36 = scalar_select %p33, %s34, %s35
    %p39 = pneg %p33
    %p40 = scmp.eq.s32.totalorder %s10, 1
    %p41 = por %p39, %p40
    %p42 = scmp.ne.s32.totalorder %s34, %s37
    %p43 = scmp.eq.s32.totalorder %s10, 0
    %p44 = por %p42, %p43
    %p45 = scmp.ne.s32.totalorder %s34, %s37
    %p46 = scmp.eq.s32.totalorder %s15, 1
    %p47 = por %p45, %p46
    %p48 = scmp.ne.s32.totalorder %s37, %s38
    %p49 = scmp.eq.s32.totalorder %s15, 0
    %p50 = por %p48, %p49
    %p51 = scmp.ne.s32.totalorder %s37, %s38
    %p52 = scmp.eq.s32.totalorder %s16, 1
    %p53 = por %p51, %p52
    %p55 = scmp.ne.s32.totalorder %s38, %s54
    %p56 = scmp.eq.s32.totalorder %s16, 0
    %p57 = por %p55, %p56
    %s59 = sadd.s32 %s58, 1
    %p62 = scmp.eq.s32.totalorder %s10, 1
    %p63 = scmp.ne.s32.totalorder %s58, %s60
    %p64 = scmp.eq.s32.totalorder %s10, 0
    %p65 = por %p63, %p64
    %p66 = scmp.ne.s32.totalorder %s58, %s60
    %p67 = scmp.eq.s32.totalorder %s15, 1
    %p68 = por %p66, %p67
    %p69 = scmp.ne.s32.totalorder %s60, %s61
    %p70 = scmp.eq.s32.totalorder %s15, 0
    %p71 = por %p69, %p70
    %p72 = scmp.ne.s32.totalorder %s60, %s61
    %p73 = scmp.eq.s32.totalorder %s16, 1
    %p74 = por %p72, %p73
    %p76 = scmp.ne.s32.totalorder %s61, %s75
    %p77 = scmp.eq.s32.totalorder %s16, 0
    %p78 = por %p76, %p77
    %s80 = sadd.s32 %s79, 1
    %p83 = scmp.eq.s32.totalorder %s10, 1
    %p84 = scmp.ne.s32.totalorder %s79, %s81
    %p85 = scmp.eq.s32.totalorder %s10, 0
    %p86 = por %p84, %p85
    %p87 = scmp.ne.s32.totalorder %s79, %s81
    %p88 = scmp.eq.s32.totalorder %s15, 1
    %p89 = por %p87, %p88
    %p90 = scmp.ne.s32.totalorder %s81, %s82
    %p91 = scmp.eq.s32.totalorder %s15, 0
    %p92 = por %p90, %p91
    %p93 = scmp.ne.s32.totalorder %s81, %s82
    %p94 = scmp.eq.s32.totalorder %s16, 1
    %p95 = por %p93, %p94
    %p97 = scmp.ne.s32.totalorder %s82, %s96
    %p98 = scmp.eq.s32.totalorder %s16, 0
    %p99 = por %p97, %p98
    %s100 = ssub.s32 %s17, %s29
    %p101 = scmp.eq.s32.totalorder %s100, 0
    %s103 = sadd.s32 %s102, 1
    %s104 = scalar_select %p101, %s102, %s103
    %p107 = pneg %p101
    %p108 = scmp.eq.s32.totalorder %s10, 1
    %p109 = por %p107, %p108
    %p110 = scmp.ne.s32.totalorder %s102, %s105
    %p111 = scmp.eq.s32.totalorder %s10, 0
    %p112 = por %p110, %p111
    %p113 = scmp.ne.s32.totalorder %s102, %s105
    %p114 = scmp.eq.s32.totalorder %s15, 1
    %p115 = por %p113, %p114
    %p116 = scmp.ne.s32.totalorder %s105, %s106
    %p117 = scmp.eq.s32.totalorder %s15, 0
    %p118 = por %p116, %p117
    %p119 = scmp.ne.s32.totalorder %s105, %s106
    %p120 = scmp.eq.s32.totalorder %s16, 1
    %p121 = por %p119, %p120
    %p123 = scmp.ne.s32.totalorder %s106, %s122
    %p124 = scmp.eq.s32.totalorder %s16, 0
    %p125 = por %p123, %p124
    %s126 = ssub.s32 %s17, %s29
    %s127 = ssub.s32 %s18, %s25
    %s128 = sor.u32 %s126, %s127
    %p129 = scmp.eq.s32.totalorder %s128, 0
    %s131 = sadd.s32 %s130, 1
    %s132 = scalar_select %p129, %s130, %s131
    %p135 = pneg %p129
    %p136 = scmp.eq.s32.totalorder %s10, 1
    %p137 = por %p135, %p136
    %p138 = scmp.ne.s32.totalorder %s130, %s133
    %p139 = scmp.eq.s32.totalorder %s10, 0
    %p140 = por %p138, %p139
    %p141 = scmp.ne.s32.totalorder %s130, %s133
    %p142 = scmp.eq.s32.totalorder %s15, 1
    %p143 = por %p141, %p142
    %p144 = scmp.ne.s32.totalorder %s133, %s134
    %p145 = scmp.eq.s32.totalorder %s15, 0
    %p146 = por %p144, %p145
    %p147 = scmp.ne.s32.totalorder %s133, %s134
    %p148 = scmp.eq.s32.totalorder %s16, 1
    %p149 = por %p147, %p148
    %p151 = scmp.ne.s32.totalorder %s134, %s150
    %p152 = scmp.eq.s32.totalorder %s16, 0
    %p153 = por %p151, %p152
    %p154 = scmp.le.s32.totalorder 1, %s10
    %p155 = scmp.lt.s32.totalorder %s10, 3
    %p156 = pnand %p154, %p155
    %p157 = pneg %p156
    // Predicated region
    $region9: #{improved_global_feature_block.3} parent=5 // pred_check
      _
    $region10: #{improved_global_feature_block.3} parent=5 // pred_check_branch
      %159 = sbr.rel (%p156) target = $region12
    $region11: #{improved_global_feature_block.3} parent=5 // pred_region
      %s160 = ssub.s32 %s10, 1
      // Predicated region
      $region13: #{improved_global_feature_block.3} parent=11 // pred_check
        %p161 = pneg %p71
      $region14: #{improved_global_feature_block.3} parent=11 // pred_check_branch
        %163 = sbr.rel (%p161) target = $region16
      $region15: #{improved_global_feature_block.3} parent=11 // pred_region
        _
      $region16: #{improved_global_feature_block.3} parent=11 // pred_fallthru
        _
      // Predicated region
      $region17: #{improved_global_feature_block.3} parent=11 // pred_check
        %p164 = pneg %p92
      $region18: #{improved_global_feature_block.3} parent=11 // pred_check_branch
        %166 = sbr.rel (%p164) target = $region20
      $region19: #{improved_global_feature_block.3} parent=11 // pred_region
        _
      $region20: #{improved_global_feature_block.3} parent=11 // pred_fallthru
        _
    $region12: #{improved_global_feature_block.3} parent=5 // pred_fallthru
      _
    %p167 = scmp.lt.s32.totalorder %s10, 2
    // Predicated region
    $region21: #{improved_global_feature_block.3} parent=5 // pred_check
      %p168 = pneg %p167
    $region22: #{improved_global_feature_block.3} parent=5 // pred_check_branch
      %170 = sbr.rel (%p168) target = $region24
    $region23: #{improved_global_feature_block.3} parent=5 // pred_region
      // Predicated region
      $region25: #{improved_global_feature_block.3} parent=23 // pred_check
        %p171 = pneg %p44
      $region26: #{improved_global_feature_block.3} parent=23 // pred_check_branch
        %173 = sbr.rel (%p171) target = $region28
      $region27: #{improved_global_feature_block.3} parent=23 // pred_region
        %s174 = smul.u32 2, %s18
        %p175 = scmp.lt.s32.totalorder %s17, 1
        %s176 = scalar_select %p175, %s17, 1
        %p177 = scmp.lt.s32.totalorder %s174, 1
        %s178 = scalar_select %p177, %s174, 1
        %s179 = smul.addr %s176, 10
        %s180 = sadd.s32 %s178, %s179
        %s181 = smul.addr %s180, 4
        %s182 = scalar_lea.vmem %s0, %s181
        %s183 = smul.u32 2, %s18
      $region28: #{improved_global_feature_block.3} parent=23 // pred_fallthru
        _
      // Predicated region
      $region29: #{improved_global_feature_block.3} parent=23 // pred_check
        %p184 = pneg %p112
      $region30: #{improved_global_feature_block.3} parent=23 // pred_check_branch
        %186 = sbr.rel (%p184) target = $region32
      $region31: #{improved_global_feature_block.3} parent=23 // pred_region
        %p187 = scmp.lt.s32.totalorder %s17, 1
        %s188 = scalar_select %p187, %s17, 1
        %s189 = smul.addr %s188, 8
        %s190 = scalar_lea.vmem %s3, %s189
      $region32: #{improved_global_feature_block.3} parent=23 // pred_fallthru
        _
    $region24: #{improved_global_feature_block.3} parent=5 // pred_fallthru
      _
    %p191 = scmp.le.s32.totalorder 1, %s10
    %p192 = scmp.lt.s32.totalorder %s10, 3
    %p193 = pnand %p191, %p192
    %p194 = pneg %p193
    // Predicated region
    $region33: #{improved_global_feature_block.3} parent=5 // pred_check
      _
    $region34: #{improved_global_feature_block.3} parent=5 // pred_check_branch
      %196 = sbr.rel (%p193) target = $region36
    $region35: #{improved_global_feature_block.3} parent=5 // pred_region
      %s197 = ssub.s32 %s10, 1
      %s198 = smul.u32 2, %s20
      %p199 = scmp.lt.s32.totalorder %s19, 1
      %s200 = scalar_select %p199, %s19, 1
      %p201 = scmp.lt.s32.totalorder %s198, 1
      %s202 = scalar_select %p201, %s198, 1
      %s203 = smul.addr %s200, 10
      %s204 = sadd.s32 %s202, %s203
      %s205 = smul.addr %s204, 4
      %s206 = scalar_lea.vmem %s0, %s205
      %p207 = pneg %p50
      %p208 = pneg %p47
      %p209 = pneg %p71
      %p210 = pneg %p68
      %p211 = pneg %p92
      %p212 = pneg %p89
      %p213 = scmp.lt.s32.totalorder %s19, 1
      %s214 = scalar_select %p213, %s19, 1
      %s215 = smul.addr %s214, 8
      %s216 = scalar_lea.vmem %s3, %s215
      %p217 = pneg %p118
      %p218 = pneg %p115
      %p219 = pneg %p146
      %p220 = pneg %p143
      %s221 = smul.u32 2, %s20
      %p222 = scmp.lt.s32.totalorder %s19, 1
      %s223 = scalar_select %p222, %s19, 1
      %p224 = scmp.lt.s32.totalorder %s221, 1
      %s225 = scalar_select %p224, %s221, 1
      %s226 = smul.addr %s223, 2
      %s227 = sadd.s32 %s225, %s226
      %s228 = smul.addr %s227, 8
      %s229 = scalar_lea.vmem %s4, %s228
      %s230 = smul.u32 2, %s20
      %p231 = scmp.lt.s32.totalorder %s19, 1
      %s232 = scalar_select %p231, %s19, 1
      %p233 = scmp.lt.s32.totalorder %s230, 1
      %s234 = scalar_select %p233, %s230, 1
      %s235 = smul.addr %s232, 10
      %s236 = sadd.s32 %s234, %s235
      %s237 = smul.addr %s236, 4
      %s238 = scalar_lea.vmem %s0, %s237
      %s239 = smul.u32 2, %s20
      %p240 = scmp.lt.s32.totalorder %s19, 1
      %s241 = scalar_select %p240, %s19, 1
      %s242 = smul.addr %s241, 8
      %s243 = scalar_lea.vmem %s3, %s242
      %s244 = smul.u32 2, %s20
      %p245 = scmp.lt.s32.totalorder %s19, 1
      %s246 = scalar_select %p245, %s19, 1
      %p247 = scmp.lt.s32.totalorder %s244, 1
      %s248 = scalar_select %p247, %s244, 1
      %s249 = smul.addr %s246, 2
      %s250 = sadd.s32 %s248, %s249
      %s251 = smul.addr %s250, 8
      %s252 = scalar_lea.vmem %s4, %s251
      %s253 = smul.u32 2, %s20
      %v255 = vld [vmem:[%s1] sm:$0xf]
      %v256 = vld [vmem:[%s238] sm:$0xff]
      %v257 = vld [vmem:[%s238 + $0x8] sm:$0xff]
      %v258 = vld [vmem:[%s238 + $0x10] sm:$0xff]
      %v259 = vld [vmem:[%s238 + $0x18] sm:$0xff]
      %v260 = vld [vmem:[%s238 + $0x20] sm:$0x33]
      %v261 = vld [vmem:[%s2] sm:$0xff]
      %263 = vset.pattern.permute.xlu0 0
      %264 = vperm.xlu0 %263, %v261
      %v265 = vpop.permute.xlu0 %264
      %v272 = vunpack.c.l.b16 %v256
      %v273 = vunpack.c.h.b16 %v256
      %v274 = vunpack.c.l.b16 %v257
      %v275 = vunpack.c.h.b16 %v257
      %v276 = vunpack.c.l.b16 %v258
      %v277 = vunpack.c.h.b16 %v258
      %v278 = vunpack.c.l.b16 %v259
      %v279 = vunpack.c.h.b16 %v259
      %v280 = vunpack.c.l.b16 %v260
      %v281 = vunpack.c.h.b16 %v260
      %v282 = vpack.c.b16 %v274, %v272
      %v283 = vpack.c.b16 %v275, %v273
      %v284 = vpack.c.b16 %v278, %v276
      %v285 = vpack.c.b16 %v279, %v277
      %v286 = vpack.c.b16 %v280, %v280
      %v287 = vpack.c.b16 %v281, %v281
      %vm292 = vcmask 293888
      %v294 = vsel %vm292, %v255, 0
      %vm296 = vcmask 1041408
      %v298 = vsel %vm296, %v286, 0
      %v301 = vsel %vm296, %v287, 0
      %303 = vmatprep.subr.bf16.mxu0 %v283
      %304 = vmatpush1.bf16.msra.mxu0 %v282
      %305 = vmatprep.subr.bf16.mxu0 %v285
      %306 = vmatpush1.bf16.msra.mxu0 %v284
      %307 = vmatprep.subr.bf16.mxu0 %v301
      %308 = vmatpush1.bf16.msra.mxu0 %v298
      %309 = vmatprep.subr.bf16.mxu0 0
      %310 = vmatpush1.bf16.msra.mxu0 0
      %311 = vmatprep.subr.bf16.mxu0 0
      %312 = vmatpush1.bf16.msra.mxu0 0
      %313 = vmatprep.subr.bf16.mxu0 0
      %314 = vmatpush1.bf16.msra.mxu0 0
      %315 = vmatprep.subr.bf16.mxu0 0
      %316 = vmatpush1.bf16.msra.mxu0 0
      %317 = vmatprep.subr.bf16.mxu0 0
      %318 = vmatpush1.bf16.msra.mxu0 0
      %319 = vmatprep.subr.bf16.mxu0 0
      %320 = vmatpush1.bf16.msra.mxu0 0
      %321 = vmatprep.subr.bf16.mxu0 0
      %322 = vmatpush1.bf16.msra.mxu0 0
      %323 = vmatprep.subr.bf16.mxu0 0
      %324 = vmatpush1.bf16.msra.mxu0 0
      %325 = vmatprep.subr.bf16.mxu0 0
      %326 = vmatpush1.bf16.msra.mxu0 0
      %327 = vmatprep.subr.bf16.mxu0 0
      %328 = vmatpush1.bf16.msra.mxu0 0
      %329 = vmatprep.subr.bf16.mxu0 0
      %330 = vmatpush1.bf16.msra.mxu0 0
      %331 = vmatprep.subr.bf16.mxu0 0
      %332 = vmatpush1.bf16.msra.mxu0 0
      %333 = vmatprep.subr.bf16.mxu0 0
      %334 = vmatpush1.bf16.msra.mxu0 0
      %335 = vmatprep.mubr.bf16.mxu0 0
      %336 = vmatmul.mubr.bf16.gmra.mrb[0].mxu0 %v294
      %v337 = vpop.f32.mrb[0].mxu0
      %v338 = vadd.f32 %v265, %v337
      %v339 = vpop.f32.mrb[0].mxu0
      %v340 = vadd.f32 %v265, %v339
      %v341 = vpop.f32.mrb[0].mxu0
      %v342 = vpop.f32.mrb[0].mxu0
      %343 = vdwg.mxu0
      %vm344 = vcmp.ge.f32.partialorder %v338, 0.0
      %vm345 = vcmp.ge.f32.partialorder %v340, 0.0
      %346 = vset.pattern.permute.xlu0 1
      %347 = vperm.xlu0 %346, %v261
      %v348 = vpop.permute.xlu0 %347
      %v350 = vmul.f32 %v348, %v338
      %v351 = vmul.f32 %v348, %v340
      %v352 = vsel %vm344, %v338, %v350
      %v353 = vsel %vm345, %v340, %v351
      %v354 = vld [vmem:[%s243] sm:$0xff]
      %356 = vset.pattern.permute.xlu0 0
      %357 = vperm.xlu0 %356, %v354
      %v358 = vpop.permute.xlu0 %357
      %v360 = vadd.f32 %v352, %v358
      %v361 = vadd.f32 %v353, %v358
      %362 = vst [vmem:[%s252] sm:$0xff] %v360
      %363 = vst [vmem:[%s252 + $0x8] sm:$0xff] %v361
      %s364 = smul.u32 2, %s20
      %p365 = scmp.lt.s32.totalorder %s19, 1
      %s366 = scalar_select %p365, %s19, 1
      %p367 = scmp.lt.s32.totalorder %s364, 1
      %s368 = scalar_select %p367, %s364, 1
      %s369 = smul.addr %s366, 2
      %s370 = sadd.s32 %s368, %s369
      %s371 = smul.addr %s370, 8
      %s372 = scalar_lea.vmem %s4, %s371
      // Predicated region
      $region37: #{improved_global_feature_block.3} parent=35 // pred_check
        %p373 = pneg %p143
      $region38: #{improved_global_feature_block.3} parent=35 // pred_check_branch
        %375 = sbr.rel (%p373) target = $region40
      $region39: #{improved_global_feature_block.3} parent=35 // pred_region
        %s376 = smul.u32 2, %s20
      $region40: #{improved_global_feature_block.3} parent=35 // pred_fallthru
        _
    $region36: #{improved_global_feature_block.3} parent=5 // pred_fallthru
      _
    %p377 = scmp.le.s32.totalorder 2, %s10
    // Predicated region
    $region41: #{improved_global_feature_block.3} parent=5 // pred_check
      %p378 = pneg %p377
    $region42: #{improved_global_feature_block.3} parent=5 // pred_check_branch
      %380 = sbr.rel (%p378) target = $region44
    $region43: #{improved_global_feature_block.3} parent=5 // pred_region
      %s381 = ssub.s32 %s10, 2
      // Predicated region
      $region45: #{improved_global_feature_block.3} parent=43 // pred_check
        %p382 = pneg %p149
      $region46: #{improved_global_feature_block.3} parent=43 // pred_check_branch
        %384 = sbr.rel (%p382) target = $region48
      $region47: #{improved_global_feature_block.3} parent=43 // pred_region
        %s385 = smul.u32 2, %s22
        %p386 = scmp.lt.s32.totalorder %s21, 1
        %s387 = scalar_select %p386, %s21, 1
        %p388 = scmp.lt.s32.totalorder %s385, 1
        %s389 = scalar_select %p388, %s385, 1
        %s390 = smul.addr %s387, 2
        %s391 = sadd.s32 %s389, %s390
        %s392 = smul.addr %s391, 8
        %s393 = scalar_lea.vmem %s4, %s392
      $region48: #{improved_global_feature_block.3} parent=43 // pred_fallthru
        _
    $region44: #{improved_global_feature_block.3} parent=5 // pred_fallthru
      _
  $region6: #{improved_global_feature_block.3} parent=0 // loop_footer
    %s14 = sadd.s32 1, %s10
  $region7: #{improved_global_feature_block.3} parent=0 // loop_footer_branch
    %9 = sbr.rel target = $region3
  $region8: #{improved_global_feature_block.3} parent=0 // loop_exit
    _

// kernel: improved_global_feature_block.2
$region0: #{improved_global_feature_block.2}
  #allocation0 [shape = 'u32[]', space=smem, size = 0x4, offset = 0x4, fixed_abs, tag = 'smem constant byte address 0x4 - core index']
  #allocation1 [shape = 'u32[144,128]{1,0:T(1,128)}', space=vmem, size = 0x12000, scoped, tag = 'internal scratch']
  %s0 = inlined_call_operand.vmem [shape: f32[8,128], index: 0, kind: input, shape index: {}]
  %s1 = inlined_call_operand.vmem [shape: f32[128,128], index: 1, kind: input, shape index: {}]
  %s2 = inlined_call_operand.vmem [shape: f32[2,128], index: 2, kind: input, shape index: {}]
  %s3 = inlined_call_operand.vmem [shape: f32[128,128], index: 3, kind: input, shape index: {}]
  %s4 = inlined_call_operand.vmem [shape: f32[2,128], index: 4, kind: input, shape index: {}]
  %s5 = inlined_call_operand.vmem [shape: f32[128,128], index: 5, kind: input, shape index: {}]
  %s6 = inlined_call_operand.vmem [shape: f32[2,128], index: 6, kind: input, shape index: {}]
  %s7 = inlined_call_operand.vmem [shape: f32[8,128], index: 7, kind: output, shape index: {}]
  %s8 = sld [smem:[#allocation0]]
  $region38: #{improved_global_feature_block.2} parent=0
    _
  %s10 = ssub.s32 1, %s8
  %s11 = scalar_select 0, %s10, %s8
  // Predicated region
  $region2: #{improved_global_feature_block.2} parent=0 // pred_check
    _
  $region3: #{improved_global_feature_block.2} parent=0 // pred_check_branch
    %13 = sbr.rel (0) target = $region5
  $region4: #{improved_global_feature_block.2} parent=0 // pred_region
    _
  $region5: #{improved_global_feature_block.2} parent=0 // pred_fallthru
    _
  // Predicated region
  $region6: #{improved_global_feature_block.2} parent=0 // pred_check
    _
  $region7: #{improved_global_feature_block.2} parent=0 // pred_check_branch
    %15 = sbr.rel (0) target = $region9
  $region8: #{improved_global_feature_block.2} parent=0 // pred_region
    _
  $region9: #{improved_global_feature_block.2} parent=0 // pred_fallthru
    _
  // Predicated region
  $region10: #{improved_global_feature_block.2} parent=0 // pred_check
    _
  $region11: #{improved_global_feature_block.2} parent=0 // pred_check_branch
    %17 = sbr.rel (0) target = $region13
  $region12: #{improved_global_feature_block.2} parent=0 // pred_region
    _
  $region13: #{improved_global_feature_block.2} parent=0 // pred_fallthru
    _
  // Predicated region
  $region14: #{improved_global_feature_block.2} parent=0 // pred_check
    _
  $region15: #{improved_global_feature_block.2} parent=0 // pred_check_branch
    %19 = sbr.rel (0) target = $region17
  $region16: #{improved_global_feature_block.2} parent=0 // pred_region
    _
  $region17: #{improved_global_feature_block.2} parent=0 // pred_fallthru
    _
  // Predicated region
  $region18: #{improved_global_feature_block.2} parent=0 // pred_check
    _
  $region19: #{improved_global_feature_block.2} parent=0 // pred_check_branch
    %21 = sbr.rel (0) target = $region21
  $region20: #{improved_global_feature_block.2} parent=0 // pred_region
    _
  $region21: #{improved_global_feature_block.2} parent=0 // pred_fallthru
    _
  // Predicated region
  $region22: #{improved_global_feature_block.2} parent=0 // pred_check
    _
  $region23: #{improved_global_feature_block.2} parent=0 // pred_check_branch
    %23 = sbr.rel (0) target = $region25
  $region24: #{improved_global_feature_block.2} parent=0 // pred_region
    _
  $region25: #{improved_global_feature_block.2} parent=0 // pred_fallthru
    _
  // Predicated region
  $region26: #{improved_global_feature_block.2} parent=0 // pred_check
    _
  $region27: #{improved_global_feature_block.2} parent=0 // pred_check_branch
    %25 = sbr.rel (0) target = $region29
  $region28: #{improved_global_feature_block.2} parent=0 // pred_region
    _
  $region29: #{improved_global_feature_block.2} parent=0 // pred_fallthru
    _
  %v26 = vld [vmem:[%s0] sm:$0xff]
  %v27 = vld [vmem:[%s1] sm:$0xff]
  %v28 = vld [vmem:[%s1 + $0x8] sm:$0xff]
  %v29 = vld [vmem:[%s1 + $0x10] sm:$0xff]
  %v30 = vld [vmem:[%s1 + $0x18] sm:$0xff]
  %v31 = vld [vmem:[%s1 + $0x20] sm:$0xff]
  %v32 = vld [vmem:[%s1 + $0x28] sm:$0xff]
  %v33 = vld [vmem:[%s1 + $0x30] sm:$0xff]
  %v34 = vld [vmem:[%s1 + $0x38] sm:$0xff]
  %v35 = vld [vmem:[%s1 + $0x40] sm:$0xff]
  %v36 = vld [vmem:[%s1 + $0x48] sm:$0xff]
  %v37 = vld [vmem:[%s1 + $0x50] sm:$0xff]
  %v38 = vld [vmem:[%s1 + $0x58] sm:$0xff]
  %v39 = vld [vmem:[%s1 + $0x60] sm:$0xff]
  %v40 = vld [vmem:[%s1 + $0x68] sm:$0xff]
  %v41 = vld [vmem:[%s1 + $0x70] sm:$0xff]
  %v42 = vld [vmem:[%s1 + $0x78] sm:$0xff]
  %v43 = vld [vmem:[%s2] sm:$0x1]
  %v44 = vlaneseq
  %v45 = vshrl.u32 %v44, 7
  %v46 = vsub.s32 0, %v45
  %v47 = vrot.slane %v43, %v46
  %48 = vmatprep.subr.mxu0 0.0
  %49 = vmatpush1.msra.mxu0 %v27
  %50 = vmatprep.subr.mxu0 0.0
  %51 = vmatpush1.msra.mxu0 %v28
  %52 = vmatprep.subr.mxu0 0.0
  %53 = vmatpush1.msra.mxu0 %v29
  %54 = vmatprep.subr.mxu0 0.0
  %55 = vmatpush1.msra.mxu0 %v30
  %56 = vmatprep.subr.mxu0 0.0
  %57 = vmatpush1.msra.mxu0 %v31
  %58 = vmatprep.subr.mxu0 0.0
  %59 = vmatpush1.msra.mxu0 %v32
  %60 = vmatprep.subr.mxu0 0.0
  %61 = vmatpush1.msra.mxu0 %v33
  %62 = vmatprep.subr.mxu0 0.0
  %63 = vmatpush1.msra.mxu0 %v34
  %64 = vmatprep.subr.mxu0 0.0
  %65 = vmatpush1.msra.mxu0 %v35
  %66 = vmatprep.subr.mxu0 0.0
  %67 = vmatpush1.msra.mxu0 %v36
  %68 = vmatprep.subr.mxu0 0.0
  %69 = vmatpush1.msra.mxu0 %v37
  %70 = vmatprep.subr.mxu0 0.0
  %71 = vmatpush1.msra.mxu0 %v38
  %72 = vmatprep.subr.mxu0 0.0
  %73 = vmatpush1.msra.mxu0 %v39
  %74 = vmatprep.subr.mxu0 0.0
  %75 = vmatpush1.msra.mxu0 %v40
  %76 = vmatprep.subr.mxu0 0.0
  %77 = vmatpush1.msra.mxu0 %v41
  %78 = vmatprep.subr.mxu0 0.0
  %79 = vmatpush1.msra.mxu0 %v42
  %80 = vmatprep.subr.mxu0 0.0
  %81 = vmatpush1.msra.mxu0 0.0
  %82 = vmatprep.subr.mxu0 0.0
  %83 = vmatpush1.msra.mxu0 0.0
  %84 = vmatprep.subr.mxu0 0.0
  %85 = vmatpush1.msra.mxu0 0.0
  %86 = vmatprep.subr.mxu0 0.0
  %87 = vmatpush1.msra.mxu0 0.0
  %88 = vmatprep.subr.mxu0 0.0
  %89 = vmatpush1.msra.mxu0 0.0
  %90 = vmatprep.subr.mxu0 0.0
  %91 = vmatpush1.msra.mxu0 0.0
  %92 = vmatprep.subr.mxu0 0.0
  %93 = vmatpush1.msra.mxu0 0.0
  %94 = vmatprep.subr.mxu0 0.0
  %95 = vmatpush1.msra.mxu0 0.0
  %96 = vmatprep.subr.mxu0 0.0
  %97 = vmatpush1.msra.mxu0 0.0
  %98 = vmatprep.subr.mxu0 0.0
  %99 = vmatpush1.msra.mxu0 0.0
  %100 = vmatprep.subr.mxu0 0.0
  %101 = vmatpush1.msra.mxu0 0.0
  %102 = vmatprep.subr.mxu0 0.0
  %103 = vmatpush1.msra.mxu0 0.0
  %104 = vmatprep.subr.mxu0 0.0
  %105 = vmatpush1.msra.mxu0 0.0
  %106 = vmatprep.subr.mxu0 0.0
  %107 = vmatpush1.msra.mxu0 0.0
  %108 = vmatprep.subr.mxu0 0.0
  %109 = vmatpush1.msra.mxu0 0.0
  %110 = vmatprep.subr.mxu0 0.0
  %111 = vmatpush1.msra.mxu0 0.0
  %112 = vmatprep.mubr.f32.mxu0 0.0
  %113 = vmatmul.mubr.f32.gmra.mrb[0].mxu0 %v26
  %v114 = vpop.f32.mrb[0].mxu0
  %v115 = vadd.f32 %v47, %v114
  %v116 = vpop.f32.mrb[0].mxu0
  %117 = vdwg.mxu0
  %vm118 = vcmp.ge.f32.partialorder %v115, 0.0
  %v119 = vld [vmem:[%s2 + $0x1] sm:$0x1]
  %v120 = vlaneseq
  %v121 = vshrl.u32 %v120, 7
  %v122 = vsub.s32 0, %v121
  %v123 = vrot.slane %v119, %v122
  %v124 = vmul.f32 %v123, %v115
  %v125 = vsel %vm118, %v115, %v124
  %v126 = vld [vmem:[%s3] sm:$0xff]
  %v127 = vld [vmem:[%s3 + $0x8] sm:$0xff]
  %v128 = vld [vmem:[%s3 + $0x10] sm:$0xff]
  %v129 = vld [vmem:[%s3 + $0x18] sm:$0xff]
  %v130 = vld [vmem:[%s3 + $0x20] sm:$0xff]
  %v131 = vld [vmem:[%s3 + $0x28] sm:$0xff]
  %v132 = vld [vmem:[%s3 + $0x30] sm:$0xff]
  %v133 = vld [vmem:[%s3 + $0x38] sm:$0xff]
  %v134 = vld [vmem:[%s3 + $0x40] sm:$0xff]
  %v135 = vld [vmem:[%s3 + $0x48] sm:$0xff]
  %v136 = vld [vmem:[%s3 + $0x50] sm:$0xff]
  %v137 = vld [vmem:[%s3 + $0x58] sm:$0xff]
  %v138 = vld [vmem:[%s3 + $0x60] sm:$0xff]
  %v139 = vld [vmem:[%s3 + $0x68] sm:$0xff]
  %v140 = vld [vmem:[%s3 + $0x70] sm:$0xff]
  %v141 = vld [vmem:[%s3 + $0x78] sm:$0xff]
  %v142 = vld [vmem:[%s4] sm:$0x1]
  %v143 = vlaneseq
  %v144 = vshrl.u32 %v143, 7
  %v145 = vsub.s32 0, %v144
  %v146 = vrot.slane %v142, %v145
  %147 = vmatprep.subr.mxu0 0.0
  %148 = vmatpush1.msra.mxu0 %v126
  %149 = vmatprep.subr.mxu0 0.0
  %150 = vmatpush1.msra.mxu0 %v127
  %151 = vmatprep.subr.mxu0 0.0
  %152 = vmatpush1.msra.mxu0 %v128
  %153 = vmatprep.subr.mxu0 0.0
  %154 = vmatpush1.msra.mxu0 %v129
  %155 = vmatprep.subr.mxu0 0.0
  %156 = vmatpush1.msra.mxu0 %v130
  %157 = vmatprep.subr.mxu0 0.0
  %158 = vmatpush1.msra.mxu0 %v131
  %159 = vmatprep.subr.mxu0 0.0
  %160 = vmatpush1.msra.mxu0 %v132
  %161 = vmatprep.subr.mxu0 0.0
  %162 = vmatpush1.msra.mxu0 %v133
  %163 = vmatprep.subr.mxu0 0.0
  %164 = vmatpush1.msra.mxu0 %v134
  %165 = vmatprep.subr.mxu0 0.0
  %166 = vmatpush1.msra.mxu0 %v135
  %167 = vmatprep.subr.mxu0 0.0
  %168 = vmatpush1.msra.mxu0 %v136
  %169 = vmatprep.subr.mxu0 0.0
  %170 = vmatpush1.msra.mxu0 %v137
  %171 = vmatprep.subr.mxu0 0.0
  %172 = vmatpush1.msra.mxu0 %v138
  %173 = vmatprep.subr.mxu0 0.0
  %174 = vmatpush1.msra.mxu0 %v139
  %175 = vmatprep.subr.mxu0 0.0
  %176 = vmatpush1.msra.mxu0 %v140
  %177 = vmatprep.subr.mxu0 0.0
  %178 = vmatpush1.msra.mxu0 %v141
  %179 = vmatprep.subr.mxu0 0.0
  %180 = vmatpush1.msra.mxu0 0.0
  %181 = vmatprep.subr.mxu0 0.0
  %182 = vmatpush1.msra.mxu0 0.0
  %183 = vmatprep.subr.mxu0 0.0
  %184 = vmatpush1.msra.mxu0 0.0
  %185 = vmatprep.subr.mxu0 0.0
  %186 = vmatpush1.msra.mxu0 0.0
  %187 = vmatprep.subr.mxu0 0.0
  %188 = vmatpush1.msra.mxu0 0.0
  %189 = vmatprep.subr.mxu0 0.0
  %190 = vmatpush1.msra.mxu0 0.0
  %191 = vmatprep.subr.mxu0 0.0
  %192 = vmatpush1.msra.mxu0 0.0
  %193 = vmatprep.subr.mxu0 0.0
  %194 = vmatpush1.msra.mxu0 0.0
  %195 = vmatprep.subr.mxu0 0.0
  %196 = vmatpush1.msra.mxu0 0.0
  %197 = vmatprep.subr.mxu0 0.0
  %198 = vmatpush1.msra.mxu0 0.0
  %199 = vmatprep.subr.mxu0 0.0
  %200 = vmatpush1.msra.mxu0 0.0
  %201 = vmatprep.subr.mxu0 0.0
  %202 = vmatpush1.msra.mxu0 0.0
  %203 = vmatprep.subr.mxu0 0.0
  %204 = vmatpush1.msra.mxu0 0.0
  %205 = vmatprep.subr.mxu0 0.0
  %206 = vmatpush1.msra.mxu0 0.0
  %207 = vmatprep.subr.mxu0 0.0
  %208 = vmatpush1.msra.mxu0 0.0
  %209 = vmatprep.subr.mxu0 0.0
  %210 = vmatpush1.msra.mxu0 0.0
  %211 = vmatprep.mubr.f32.mxu0 0.0
  %212 = vmatmul.mubr.f32.gmra.mrb[0].mxu0 %v125
  %v213 = vpop.f32.mrb[0].mxu0
  %v214 = vadd.f32 %v146, %v213
  %v215 = vpop.f32.mrb[0].mxu0
  %216 = vdwg.mxu0
  %vm217 = vcmp.ge.f32.partialorder %v214, 0.0
  %v218 = vld [vmem:[%s4 + $0x1] sm:$0x1]
  %v219 = vlaneseq
  %v220 = vshrl.u32 %v219, 7
  %v221 = vsub.s32 0, %v220
  %v222 = vrot.slane %v218, %v221
  %v223 = vmul.f32 %v222, %v214
  %v224 = vsel %vm217, %v214, %v223
  %v225 = vld [vmem:[%s5] sm:$0xff]
  %v226 = vld [vmem:[%s5 + $0x8] sm:$0xff]
  %v227 = vld [vmem:[%s5 + $0x10] sm:$0xff]
  %v228 = vld [vmem:[%s5 + $0x18] sm:$0xff]
  %v229 = vld [vmem:[%s5 + $0x20] sm:$0xff]
  %v230 = vld [vmem:[%s5 + $0x28] sm:$0xff]
  %v231 = vld [vmem:[%s5 + $0x30] sm:$0xff]
  %v232 = vld [vmem:[%s5 + $0x38] sm:$0xff]
  %v233 = vld [vmem:[%s5 + $0x40] sm:$0xff]
  %v234 = vld [vmem:[%s5 + $0x48] sm:$0xff]
  %v235 = vld [vmem:[%s5 + $0x50] sm:$0xff]
  %v236 = vld [vmem:[%s5 + $0x58] sm:$0xff]
  %v237 = vld [vmem:[%s5 + $0x60] sm:$0xff]
  %v238 = vld [vmem:[%s5 + $0x68] sm:$0xff]
  %v239 = vld [vmem:[%s5 + $0x70] sm:$0xff]
  %v240 = vld [vmem:[%s5 + $0x78] sm:$0xff]
  %v241 = vld [vmem:[%s6] sm:$0x1]
  %v242 = vlaneseq
  %v243 = vshrl.u32 %v242, 7
  %v244 = vsub.s32 0, %v243
  %v245 = vrot.slane %v241, %v244
  %246 = vmatprep.subr.mxu0 0.0
  %247 = vmatpush1.msra.mxu0 %v225
  %248 = vmatprep.subr.mxu0 0.0
  %249 = vmatpush1.msra.mxu0 %v226
  %250 = vmatprep.subr.mxu0 0.0
  %251 = vmatpush1.msra.mxu0 %v227
  %252 = vmatprep.subr.mxu0 0.0
  %253 = vmatpush1.msra.mxu0 %v228
  %254 = vmatprep.subr.mxu0 0.0
  %255 = vmatpush1.msra.mxu0 %v229
  %256 = vmatprep.subr.mxu0 0.0
  %257 = vmatpush1.msra.mxu0 %v230
  %258 = vmatprep.subr.mxu0 0.0
  %259 = vmatpush1.msra.mxu0 %v231
  %260 = vmatprep.subr.mxu0 0.0
  %261 = vmatpush1.msra.mxu0 %v232
  %262 = vmatprep.subr.mxu0 0.0
  %263 = vmatpush1.msra.mxu0 %v233
  %264 = vmatprep.subr.mxu0 0.0
  %265 = vmatpush1.msra.mxu0 %v234
  %266 = vmatprep.subr.mxu0 0.0
  %267 = vmatpush1.msra.mxu0 %v235
  %268 = vmatprep.subr.mxu0 0.0
  %269 = vmatpush1.msra.mxu0 %v236
  %270 = vmatprep.subr.mxu0 0.0
  %271 = vmatpush1.msra.mxu0 %v237
  %272 = vmatprep.subr.mxu0 0.0
  %273 = vmatpush1.msra.mxu0 %v238
  %274 = vmatprep.subr.mxu0 0.0
  %275 = vmatpush1.msra.mxu0 %v239
  %276 = vmatprep.subr.mxu0 0.0
  %277 = vmatpush1.msra.mxu0 %v240
  %278 = vmatprep.subr.mxu0 0.0
  %279 = vmatpush1.msra.mxu0 0.0
  %280 = vmatprep.subr.mxu0 0.0
  %281 = vmatpush1.msra.mxu0 0.0
  %282 = vmatprep.subr.mxu0 0.0
  %283 = vmatpush1.msra.mxu0 0.0
  %284 = vmatprep.subr.mxu0 0.0
  %285 = vmatpush1.msra.mxu0 0.0
  %286 = vmatprep.subr.mxu0 0.0
  %287 = vmatpush1.msra.mxu0 0.0
  %288 = vmatprep.subr.mxu0 0.0
  %289 = vmatpush1.msra.mxu0 0.0
  %290 = vmatprep.subr.mxu0 0.0
  %291 = vmatpush1.msra.mxu0 0.0
  %292 = vmatprep.subr.mxu0 0.0
  %293 = vmatpush1.msra.mxu0 0.0
  %294 = vmatprep.subr.mxu0 0.0
  %295 = vmatpush1.msra.mxu0 0.0
  %296 = vmatprep.subr.mxu0 0.0
  %297 = vmatpush1.msra.mxu0 0.0
  %298 = vmatprep.subr.mxu0 0.0
  %299 = vmatpush1.msra.mxu0 0.0
  %300 = vmatprep.subr.mxu0 0.0
  %301 = vmatpush1.msra.mxu0 0.0
  %302 = vmatprep.subr.mxu0 0.0
  %303 = vmatpush1.msra.mxu0 0.0
  %304 = vmatprep.subr.mxu0 0.0
  %305 = vmatpush1.msra.mxu0 0.0
  %306 = vmatprep.subr.mxu0 0.0
  %307 = vmatpush1.msra.mxu0 0.0
  %308 = vmatprep.subr.mxu0 0.0
  %309 = vmatpush1.msra.mxu0 0.0
  %310 = vmatprep.mubr.f32.mxu0 0.0
  %311 = vmatmul.mubr.f32.gmra.mrb[0].mxu0 %v224
  %v312 = vpop.f32.mrb[0].mxu0
  %v313 = vadd.f32 %v245, %v312
  %v314 = vpop.f32.mrb[0].mxu0
  %315 = vdwg.mxu0
  %vm316 = vcmp.ge.f32.partialorder %v313, 0.0
  %v317 = vld [vmem:[%s6 + $0x1] sm:$0x1]
  %v318 = vlaneseq
  %v319 = vshrl.u32 %v318, 7
  %v320 = vsub.s32 0, %v319
  %v321 = vrot.slane %v317, %v320
  %v322 = vmul.f32 %v321, %v313
  %v323 = vsel %vm316, %v313, %v322
  %324 = vst [vmem:[%s7] sm:$0xff] %v323
  // Predicated region
  $region30: #{improved_global_feature_block.2} parent=0 // pred_check
    _
  $region31: #{improved_global_feature_block.2} parent=0 // pred_check_branch
    %326 = sbr.rel (0) target = $region33
  $region32: #{improved_global_feature_block.2} parent=0 // pred_region
    _
  $region33: #{improved_global_feature_block.2} parent=0 // pred_fallthru
    _
  // Predicated region
  $region34: #{improved_global_feature_block.2} parent=0 // pred_check
    _
  $region35: #{improved_global_feature_block.2} parent=0 // pred_check_branch
    %328 = sbr.rel (0) target = $region37
  $region36: #{improved_global_feature_block.2} parent=0 // pred_region
    _
  $region37: #{improved_global_feature_block.2} parent=0 // pred_fallthru
    _

</llo_original>
